<compile_context>
chip_gen: v5e
topology: v5e:2x2
jax: 0.10.0
libtpu: 0.0.40
codegen_flags: <defaults>
</compile_context>

<pallas_src>
import functools

import jax
import jax.numpy as jnp
from jax.experimental import pallas as pl
from jax.experimental.pallas import tpu as pltpu


_LANE = 128      # lane width / MXU N dimension
_SUB = 16        # batch-row granularity (bf16 sublane packing)
_DEF_TB = 256    # max batch tile for large batches (v5e/v6e roofline-friendly)


def _round_up(n, m):
    return (n + m - 1) // m * m


def _pad_to(a, shape):
    pads = tuple((0, s - d) for d, s in zip(a.shape, shape))
    if all(p == (0, 0) for p in pads):
        return a
    return jnp.pad(a, pads)


def _ae_kernel(x_ref,
               w1_ref, b1_ref, w2_ref, b2_ref,
               w3_ref, b3_ref, w4_ref, b4_ref,
               zh_ref, xh_ref):
    """Fused AutoEncoder forward on one (TB, Dp) batch tile.

    bf16 matmuls with f32 accumulation; bias/ReLU elementwise work in f32.
    The f32->bf16 cast of x is done here (free VPU filler under MXU slack).
    """
    x = x_ref[...].astype(jnp.bfloat16)                       # (TB, Dp)

    # ---- encoder ----
    h1 = jnp.dot(x, w1_ref[...], preferred_element_type=jnp.float32)
    h1 = jnp.maximum(h1 + b1_ref[...], 0.0)
    zh = jnp.dot(h1.astype(jnp.bfloat16), w2_ref[...],
                 preferred_element_type=jnp.float32) + b2_ref[...]
    zh_ref[...] = zh.astype(zh_ref.dtype)

    # ---- decoder ----
    h2 = jnp.dot(zh.astype(jnp.bfloat16), w3_ref[...],
                 preferred_element_type=jnp.float32)
    h2 = jnp.maximum(h2 + b3_ref[...], 0.0)
    xh = jnp.dot(h2.astype(jnp.bfloat16), w4_ref[...],
                 preferred_element_type=jnp.float32) + b4_ref[...]
    xh_ref[...] = xh.astype(xh_ref.dtype)                     # bf16 writeback


def prepare_params(params):
    """Pad/cast weights ONCE (lane-dense bf16 matmul operands, f32 biases).

    Zero padding is exact: padded weight rows/cols and bias entries are zero,
    so the real output entries are untouched and padding is sliced off later.
    """
    D, HID = params["w1"].shape
    L = params["w2"].shape[1]
    Dp, HIDp, Lp = _round_up(D, _LANE), _round_up(HID, _LANE), _round_up(L, _LANE)
    bf16, f32 = jnp.bfloat16, jnp.float32
    return {
        "w1": _pad_to(params["w1"].astype(bf16), (Dp, HIDp)),
        "b1": _pad_to(params["b1"].astype(f32).reshape(1, -1), (1, HIDp)),
        "w2": _pad_to(params["w2"].astype(bf16), (HIDp, Lp)),
        "b2": _pad_to(params["b2"].astype(f32).reshape(1, -1), (1, Lp)),
        "w3": _pad_to(params["w3"].astype(bf16), (Lp, HIDp)),
        "b3": _pad_to(params["b3"].astype(f32).reshape(1, -1), (1, HIDp)),
        "w4": _pad_to(params["w4"].astype(bf16), (HIDp, Dp)),
        "b4": _pad_to(params["b4"].astype(f32).reshape(1, -1), (1, Dp)),
    }


def autoencoder_forward(x, pparams, num_slots, slot_dim, *, batch_tile=_DEF_TB):
    """x: [B, C, H, W] float32, pparams: output of prepare_params.

    Returns (zh [B, num_slots, slot_dim] f32, xh [B, C, H, W] bf16).
    Callers needing f32 xh can cast outside (kernel emits bf16 to halve the
    dominant HBM writeback).
    """
    B, C, H, W = x.shape
    D = C * H * W
    L = num_slots * slot_dim
    Dp, HIDp = pparams["w1"].shape
    Lp = pparams["w2"].shape[1]
    assert Dp >= D and Lp >= L

    # Batch tiling: clamp to the real batch (no 2->128 padding waste); when the
    # batch is big enough, target >=2 tiles so the "parallel" grid axis can use
    # both TensorCores on v7x.
    tb0 = min(batch_tile, _round_up(B, _SUB))
    n_tiles = max(pl.cdiv(B, tb0), 2 if B > _SUB else 1)
    TB = _round_up(pl.cdiv(B, n_tiles), _SUB)
    n_tiles = pl.cdiv(B, TB)
    Bp = n_tiles * TB

    f32, bf16 = jnp.float32, jnp.bfloat16

    # Keep x in f32 (no extra cast pass over the activations in the wrapper);
    # pad rows/cols only if actually required.
    x_flat = _pad_to(x.reshape(B, D), (Bp, Dp))

    w1, b1 = pparams["w1"], pparams["b1"]
    w2, b2 = pparams["w2"], pparams["b2"]
    w3, b3 = pparams["w3"], pparams["b3"]
    w4, b4 = pparams["w4"], pparams["b4"]

    def resident(a):
        # Constant index_map: same block for every batch tile -> fetched once,
        # stays VMEM-resident. Buffered(1): the block never changes, so
        # double-buffering it only wastes VMEM (matters on v7x's 64 MiB).
        return pl.BlockSpec(a.shape, lambda i: (0, 0),
                            pipeline_mode=pl.Buffered(1))

    grid_spec = pltpu.PrefetchScalarGridSpec(
        num_scalar_prefetch=0,
        grid=(n_tiles,),
        in_specs=[
            pl.BlockSpec((TB, Dp), lambda i: (i, 0)),   # x: batch-tiled, f32
            resident(w1), resident(b1),
            resident(w2), resident(b2),
            resident(w3), resident(b3),
            resident(w4), resident(b4),
        ],
        out_specs=[
            pl.BlockSpec((TB, Lp), lambda i: (i, 0)),   # zh (lane-dense, f32)
            pl.BlockSpec((TB, Dp), lambda i: (i, 0)),   # xh (bf16)
        ],
    )

    flops = 2 * Bp * (Dp * HIDp + HIDp * Lp + Lp * HIDp + HIDp * Dp)
    bytes_accessed = (
        Bp * Dp * 4                                             # x in (f32)
        + (w1.size + w2.size + w3.size + w4.size) * 2           # bf16 weights
        + (b1.size + b2.size + b3.size + b4.size) * 4           # f32 biases
        + Bp * Lp * 4                                           # zh out (f32)
        + Bp * Dp * 2)                                          # xh out (bf16)

    zh_pad, xh_pad = pl.pallas_call(
        _ae_kernel,
        out_shape=(
            jax.ShapeDtypeStruct((Bp, Lp), f32),
            jax.ShapeDtypeStruct((Bp, Dp), bf16),
        ),
        grid_spec=grid_spec,
        compiler_params=pltpu.CompilerParams(
            # Independent batch tiles -> shard across TensorCores (2x on v7x).
            dimension_semantics=("parallel",),
            # <= ~48 MiB keeps headroom on v7x's 64 MiB/core while allowing big
            # activation tiles on v5e/v6e (128 MiB).
            vmem_limit_bytes=48 * 1024 * 1024,
        ),
        cost_estimate=pl.CostEstimate(
            flops=flops, transcendentals=0, bytes_accessed=bytes_accessed),
    )(x_flat, w1, b1, w2, b2, w3, b3, w4, b4)

    zh = zh_pad[:B, :L].reshape(B, num_slots, slot_dim)
    xh = xh_pad[:B, :D].reshape(B, C, H, W)
    return zh, xh


def _init_params(key, D, HID, L):
    ks = jax.random.split(key, 4)
    scale = 0.02
    return {
        "w1": scale * jax.random.normal(ks[0], (D, HID), jnp.float32),
        "b1": jnp.zeros((1, HID), jnp.float32),
        "w2": scale * jax.random.normal(ks[1], (HID, L), jnp.float32),
        "b2": jnp.zeros((1, L), jnp.float32),
        "w3": scale * jax.random.normal(ks[2], (L, HID), jnp.float32),
        "b3": jnp.zeros((1, HID), jnp.float32),
        "w4": scale * jax.random.normal(ks[3], (HID, D), jnp.float32),
        "b4": jnp.zeros((1, D), jnp.float32),
    }


if __name__ == "__main__":
    # small shapes consistent with the module's forward
    B, C, H, W = 2, 4, 16, 16
    num_slots, slot_dim = 4, 8
    HID = 128
    D = C * H * W
    L = num_slots * slot_dim

    key = jax.random.PRNGKey(0)
    kx, kp = jax.random.split(key)
    x = jax.random.normal(kx, (B, C, H, W), jnp.float32)
    params = _init_params(kp, D, HID, L)

    # Padded bf16 weights / f32 biases prepared once, reused every forward.
    pparams = prepare_params(params)

    fwd = jax.jit(functools.partial(autoencoder_forward,
                                    num_slots=num_slots, slot_dim=slot_dim))
    zh, xh = fwd(x, pparams)
    jax.block_until_ready((zh, xh))

    # sanity check vs. pure-JAX reference that mirrors the bf16-matmul /
    # f32-accumulate arithmetic of the kernel.
    def bdot(a, w):
        return jnp.dot(a.astype(jnp.bfloat16), w.astype(jnp.bfloat16),
                       preferred_element_type=jnp.float32)

    x_flat = x.reshape(B, D)
    h1 = jnp.maximum(bdot(x_flat, params["w1"]) + params["b1"], 0.0)
    zh_ref = bdot(h1, params["w2"]) + params["b2"]
    h2 = jnp.maximum(bdot(zh_ref, params["w3"]) + params["b3"], 0.0)
    xh_ref = (bdot(h2, params["w4"]) + params["b4"]).reshape(B, C, H, W)

    assert zh.shape == (B, num_slots, slot_dim)
    assert xh.shape == (B, C, H, W)
    assert xh.dtype == jnp.bfloat16
    assert jnp.allclose(zh, zh_ref.reshape(B, num_slots, slot_dim),
                        atol=1e-2, rtol=1e-2)
    assert jnp.allclose(xh.astype(jnp.float32), xh_ref, atol=1e-2, rtol=2e-2)

    print("KERNEL_OK")
</pallas_src>

<mosaic_0001>
module attributes {stable_mosaic.version = 11 : i64} {
  func.func @_ae_kernel(%arg0: i32, %arg1: memref<16x1024xf32, #tpu.memory_space<vmem>>, %arg2: memref<1024x128xbf16, #tpu.memory_space<vmem>>, %arg3: memref<1x128xf32, #tpu.memory_space<vmem>>, %arg4: memref<128x128xbf16, #tpu.memory_space<vmem>>, %arg5: memref<1x128xf32, #tpu.memory_space<vmem>>, %arg6: memref<128x128xbf16, #tpu.memory_space<vmem>>, %arg7: memref<1x128xf32, #tpu.memory_space<vmem>>, %arg8: memref<128x1024xbf16, #tpu.memory_space<vmem>>, %arg9: memref<1x1024xf32, #tpu.memory_space<vmem>>, %arg10: memref<16x128xf32, #tpu.memory_space<vmem>>, %arg11: memref<16x1024xbf16, #tpu.memory_space<vmem>>) attributes {dimension_semantics = [#tpu.dimension_semantics<parallel>], iteration_bounds = array<i64: 1>, scalar_prefetch = 0 : i64, scratch_operands = 0 : i64, tpu.core_type = #tpu.core_type<tc>, window_params = [{transform_indices = @transform_0, window_bounds = array<i64: 16, 1024>}, {pipeline_mode = #tpu.pipeline_mode<synchronous>, transform_indices = @transform_1, window_bounds = array<i64: 1024, 128>}, {pipeline_mode = #tpu.pipeline_mode<synchronous>, transform_indices = @transform_2, window_bounds = array<i64: 1, 128>}, {pipeline_mode = #tpu.pipeline_mode<synchronous>, transform_indices = @transform_3, window_bounds = array<i64: 128, 128>}, {pipeline_mode = #tpu.pipeline_mode<synchronous>, transform_indices = @transform_4, window_bounds = array<i64: 1, 128>}, {pipeline_mode = #tpu.pipeline_mode<synchronous>, transform_indices = @transform_5, window_bounds = array<i64: 128, 128>}, {pipeline_mode = #tpu.pipeline_mode<synchronous>, transform_indices = @transform_6, window_bounds = array<i64: 1, 128>}, {pipeline_mode = #tpu.pipeline_mode<synchronous>, transform_indices = @transform_7, window_bounds = array<i64: 128, 1024>}, {pipeline_mode = #tpu.pipeline_mode<synchronous>, transform_indices = @transform_8, window_bounds = array<i64: 1, 1024>}, {transform_indices = @transform_9, window_bounds = array<i64: 16, 128>}, {transform_indices = @transform_10, window_bounds = array<i64: 16, 1024>}]} {
    %c0 = arith.constant 0 : index
    %c0_0 = arith.constant 0 : index
    %0 = vector.load %arg1[%c0, %c0_0] : memref<16x1024xf32, #tpu.memory_space<vmem>>, vector<16x1024xf32>
    %1 = arith.truncf %0 : vector<16x1024xf32> to vector<16x1024xbf16>
    %c0_1 = arith.constant 0 : index
    %c0_2 = arith.constant 0 : index
    %2 = vector.load %arg2[%c0_1, %c0_2] : memref<1024x128xbf16, #tpu.memory_space<vmem>>, vector<1024x128xbf16>
    %cst = arith.constant dense<0.000000e+00> : vector<16x128xf32>
    %3 = tpu.matmul %1, %2, %cst {dimension_numbers = #tpu.dot_dimension_numbers<[1], [0], [0], [1], [0, 0, 1, 1], [], []>} : vector<16x1024xbf16>, vector<1024x128xbf16>, vector<16x128xf32> -> vector<16x128xf32>
    %c0_3 = arith.constant 0 : index
    %c0_4 = arith.constant 0 : index
    %4 = vector.load %arg3[%c0_3, %c0_4] : memref<1x128xf32, #tpu.memory_space<vmem>>, vector<1x128xf32>
    %5 = vector.broadcast %4 : vector<1x128xf32> to vector<16x128xf32>
    %6 = arith.addf %3, %5 : vector<16x128xf32>
    %cst_5 = arith.constant 0.000000e+00 : f32
    %7 = vector.broadcast %cst_5 : f32 to vector<16x128xf32>
    %8 = arith.maximumf %6, %7 : vector<16x128xf32>
    %9 = arith.truncf %8 : vector<16x128xf32> to vector<16x128xbf16>
    %c0_6 = arith.constant 0 : index
    %c0_7 = arith.constant 0 : index
    %10 = vector.load %arg4[%c0_6, %c0_7] : memref<128x128xbf16, #tpu.memory_space<vmem>>, vector<128x128xbf16>
    %cst_8 = arith.constant dense<0.000000e+00> : vector<16x128xf32>
    %11 = tpu.matmul %9, %10, %cst_8 {dimension_numbers = #tpu.dot_dimension_numbers<[1], [0], [0], [1], [0, 0, 1, 1], [], []>} : vector<16x128xbf16>, vector<128x128xbf16>, vector<16x128xf32> -> vector<16x128xf32>
    %c0_9 = arith.constant 0 : index
    %c0_10 = arith.constant 0 : index
    %12 = vector.load %arg5[%c0_9, %c0_10] : memref<1x128xf32, #tpu.memory_space<vmem>>, vector<1x128xf32>
    %13 = vector.broadcast %12 : vector<1x128xf32> to vector<16x128xf32>
    %14 = arith.addf %11, %13 : vector<16x128xf32>
    %c0_11 = arith.constant 0 : index
    %c0_12 = arith.constant 0 : index
    %15 = vector.load %arg10[%c0_11, %c0_12] : memref<16x128xf32, #tpu.memory_space<vmem>>, vector<16x128xf32>
    tpu.vector_store %arg10[%c0_11, %c0_12], %14 {strides = array<i32>} : memref<16x128xf32, #tpu.memory_space<vmem>>, vector<16x128xf32>,
    %16 = arith.truncf %14 : vector<16x128xf32> to vector<16x128xbf16>
    %c0_13 = arith.constant 0 : index
    %c0_14 = arith.constant 0 : index
    %17 = vector.load %arg6[%c0_13, %c0_14] : memref<128x128xbf16, #tpu.memory_space<vmem>>, vector<128x128xbf16>
    %cst_15 = arith.constant dense<0.000000e+00> : vector<16x128xf32>
    %18 = tpu.matmul %16, %17, %cst_15 {dimension_numbers = #tpu.dot_dimension_numbers<[1], [0], [0], [1], [0, 0, 1, 1], [], []>} : vector<16x128xbf16>, vector<128x128xbf16>, vector<16x128xf32> -> vector<16x128xf32>
    %c0_16 = arith.constant 0 : index
    %c0_17 = arith.constant 0 : index
    %19 = vector.load %arg7[%c0_16, %c0_17] : memref<1x128xf32, #tpu.memory_space<vmem>>, vector<1x128xf32>
    %20 = vector.broadcast %19 : vector<1x128xf32> to vector<16x128xf32>
    %21 = arith.addf %18, %20 : vector<16x128xf32>
    %cst_18 = arith.constant 0.000000e+00 : f32
    %22 = vector.broadcast %cst_18 : f32 to vector<16x128xf32>
    %23 = arith.maximumf %21, %22 : vector<16x128xf32>
    %24 = arith.truncf %23 : vector<16x128xf32> to vector<16x128xbf16>
    %c0_19 = arith.constant 0 : index
    %c0_20 = arith.constant 0 : index
    %25 = vector.load %arg8[%c0_19, %c0_20] : memref<128x1024xbf16, #tpu.memory_space<vmem>>, vector<128x1024xbf16>
    %cst_21 = arith.constant dense<0.000000e+00> : vector<16x1024xf32>
    %26 = tpu.matmul %24, %25, %cst_21 {dimension_numbers = #tpu.dot_dimension_numbers<[1], [0], [0], [1], [0, 0, 1, 1], [], []>} : vector<16x128xbf16>, vector<128x1024xbf16>, vector<16x1024xf32> -> vector<16x1024xf32>
    %c0_22 = arith.constant 0 : index
    %c0_23 = arith.constant 0 : index
    %27 = vector.load %arg9[%c0_22, %c0_23] : memref<1x1024xf32, #tpu.memory_space<vmem>>, vector<1x1024xf32>
    %28 = vector.broadcast %27 : vector<1x1024xf32> to vector<16x1024xf32>
    %29 = arith.addf %26, %28 : vector<16x1024xf32>
    %30 = arith.truncf %29 : vector<16x1024xf32> to vector<16x1024xbf16>
    %c0_24 = arith.constant 0 : index
    %c0_25 = arith.constant 0 : index
    %31 = vector.load %arg11[%c0_24, %c0_25] : memref<16x1024xbf16, #tpu.memory_space<vmem>>, vector<16x1024xbf16>
    tpu.vector_store %arg11[%c0_24, %c0_25], %30 {strides = array<i32>} : memref<16x1024xbf16, #tpu.memory_space<vmem>>, vector<16x1024xbf16>,
    return
  }
  func.func @transform_0(%arg0: i32) -> (i32, i32) {
    %c0_i32 = arith.constant 0 : i32
    %c0_i32_0 = arith.constant 0 : i32
    return %arg0, %c0_i32 : i32, i32
  }
  func.func @transform_1(%arg0: i32) -> (i32, i32) {
    %c0_i32 = arith.constant 0 : i32
    %c0_i32_0 = arith.constant 0 : i32
    %c0_i32_1 = arith.constant 0 : i32
    return %c0_i32, %c0_i32_0 : i32, i32
  }
  func.func @transform_2(%arg0: i32) -> (i32, i32) {
    %c0_i32 = arith.constant 0 : i32
    %c0_i32_0 = arith.constant 0 : i32
    %c0_i32_1 = arith.constant 0 : i32
    return %c0_i32, %c0_i32_0 : i32, i32
  }
  func.func @transform_3(%arg0: i32) -> (i32, i32) {
    %c0_i32 = arith.constant 0 : i32
    %c0_i32_0 = arith.constant 0 : i32
    %c0_i32_1 = arith.constant 0 : i32
    return %c0_i32, %c0_i32_0 : i32, i32
  }
  func.func @transform_4(%arg0: i32) -> (i32, i32) {
    %c0_i32 = arith.constant 0 : i32
    %c0_i32_0 = arith.constant 0 : i32
    %c0_i32_1 = arith.constant 0 : i32
    return %c0_i32, %c0_i32_0 : i32, i32
  }
  func.func @transform_5(%arg0: i32) -> (i32, i32) {
    %c0_i32 = arith.constant 0 : i32
    %c0_i32_0 = arith.constant 0 : i32
    %c0_i32_1 = arith.constant 0 : i32
    return %c0_i32, %c0_i32_0 : i32, i32
  }
  func.func @transform_6(%arg0: i32) -> (i32, i32) {
    %c0_i32 = arith.constant 0 : i32
    %c0_i32_0 = arith.constant 0 : i32
    %c0_i32_1 = arith.constant 0 : i32
    return %c0_i32, %c0_i32_0 : i32, i32
  }
  func.func @transform_7(%arg0: i32) -> (i32, i32) {
    %c0_i32 = arith.constant 0 : i32
    %c0_i32_0 = arith.constant 0 : i32
    %c0_i32_1 = arith.constant 0 : i32
    return %c0_i32, %c0_i32_0 : i32, i32
  }
  func.func @transform_8(%arg0: i32) -> (i32, i32) {
    %c0_i32 = arith.constant 0 : i32
    %c0_i32_0 = arith.constant 0 : i32
    %c0_i32_1 = arith.constant 0 : i32
    return %c0_i32, %c0_i32_0 : i32, i32
  }
  func.func @transform_9(%arg0: i32) -> (i32, i32) {
    %c0_i32 = arith.constant 0 : i32
    %c0_i32_0 = arith.constant 0 : i32
    return %arg0, %c0_i32 : i32, i32
  }
  func.func @transform_10(%arg0: i32) -> (i32, i32) {
    %c0_i32 = arith.constant 0 : i32
    %c0_i32_0 = arith.constant 0 : i32
    return %arg0, %c0_i32 : i32, i32
  }
}

</mosaic_0001>

<llo_original>
// kernel: autoencoder_forward.1
$region0: #{autoencoder_forward.1}
  #allocation0 [shape = 'u32[]', space=smem, size = 0x4, offset = 0x4, fixed_abs, tag = 'smem constant byte address 0x4 - core index']
  #allocation1 [shape = 'u32[72,128]{1,0:T(1,128)}', space=vmem, size = 0x9000, scoped, tag = 'internal scratch']
  %s0 = inlined_call_operand.vmem [shape: f32[16,1024], index: 0, kind: input, shape index: {}]
  %s1 = inlined_call_operand.hbm [shape: bf16[1024,128], index: 1, kind: input, shape index: {}]
  %s2 = inlined_call_operand.vmem [shape: f32[1,128], index: 2, kind: input, shape index: {}]
  %s3 = inlined_call_operand.vmem [shape: bf16[128,128], index: 3, kind: input, shape index: {}]
  %s4 = inlined_call_operand.vmem [shape: f32[1,128], index: 4, kind: input, shape index: {}]
  %s5 = inlined_call_operand.vmem [shape: bf16[128,128], index: 5, kind: input, shape index: {}]
  %s6 = inlined_call_operand.vmem [shape: f32[1,128], index: 6, kind: input, shape index: {}]
  %s7 = inlined_call_operand.hbm [shape: bf16[128,1024], index: 7, kind: input, shape index: {}]
  %s8 = inlined_call_operand.vmem [shape: f32[1,1024], index: 8, kind: input, shape index: {}]
  %s9 = inlined_call_operand.vmem [shape: f32[16,128], index: 9, kind: output, shape index: {0}]
  %s10 = inlined_call_operand.vmem [shape: bf16[16,1024], index: 10, kind: output, shape index: {1}]
  %11 = xla_tuple %s9, %s10
  %s12 = sld [smem:[#allocation0]]
  $region62: #{autoencoder_forward.1} parent=0
    _
  %s14 = ssub.s32 1, %s12
  %s15 = scalar_select 0, %s14, %s12
  $region1: #{autoencoder_forward.1} parent=0
    #allocation2 [shape = 'u8[262144]{0}', space=vmem, size = 0x40000, scoped, tag = 'input window, operand 1, single buffered']
    #allocation3 [shape = 's32[1]{0}', space=sflag, size = 0x4, scoped, tag = 'scoped memory for autoencoder_forward.1']
    #allocation4 [shape = 'u8[262144]{0}', space=vmem, size = 0x40000, scoped, tag = 'input window, operand 7, single buffered']
    #allocation5 [shape = 's32[1]{0}', space=sflag, size = 0x4, scoped, tag = 'scoped memory for autoencoder_forward.1']
    %16 = vsyncpa [#allocation3], 0
    %17 = vsyncpa [#allocation5], 0
    // Predicated region
    $region2: #{autoencoder_forward.1} parent=1 // pred_check
      _
    $region3: #{autoencoder_forward.1} parent=1 // pred_check_branch
      %19 = sbr.rel (0) target = $region5
    $region4: #{autoencoder_forward.1} parent=1 // pred_region
      _
    $region5: #{autoencoder_forward.1} parent=1 // pred_fallthru
      _
    // Predicated region
    $region6: #{autoencoder_forward.1} parent=1 // pred_check
      _
    $region7: #{autoencoder_forward.1} parent=1 // pred_check_branch
      %21 = sbr.rel (0) target = $region9
    $region8: #{autoencoder_forward.1} parent=1 // pred_region
      %23 = vsyncadd [#allocation3], 0
      %s24 = sshll.u32 %s1, 4
      %s25 = int_to_ptr.hbm [resolvable:$true] %s24
      %s26 = sshll.u32 [#allocation2], 4
      %s27 = int_to_ptr.vmem [resolvable:$true] %s26
      %32 = dma.hbm_to_vmem [thread:$0]  %s25, 8192, %s27, [#allocation3], 64, 64, 4
    $region9: #{autoencoder_forward.1} parent=1 // pred_fallthru
      _
    // Predicated region
    $region10: #{autoencoder_forward.1} parent=1 // pred_check
      _
    $region11: #{autoencoder_forward.1} parent=1 // pred_check_branch
      %34 = sbr.rel (0) target = $region13
    $region12: #{autoencoder_forward.1} parent=1 // pred_region
      _
    $region13: #{autoencoder_forward.1} parent=1 // pred_fallthru
      _
    // Predicated region
    $region14: #{autoencoder_forward.1} parent=1 // pred_check
      _
    $region15: #{autoencoder_forward.1} parent=1 // pred_check_branch
      %36 = sbr.rel (0) target = $region17
    $region16: #{autoencoder_forward.1} parent=1 // pred_region
      _
    $region17: #{autoencoder_forward.1} parent=1 // pred_fallthru
      _
    // Predicated region
    $region18: #{autoencoder_forward.1} parent=1 // pred_check
      _
    $region19: #{autoencoder_forward.1} parent=1 // pred_check_branch
      %38 = sbr.rel (0) target = $region21
    $region20: #{autoencoder_forward.1} parent=1 // pred_region
      _
    $region21: #{autoencoder_forward.1} parent=1 // pred_fallthru
      _
    // Predicated region
    $region22: #{autoencoder_forward.1} parent=1 // pred_check
      _
    $region23: #{autoencoder_forward.1} parent=1 // pred_check_branch
      %40 = sbr.rel (0) target = $region25
    $region24: #{autoencoder_forward.1} parent=1 // pred_region
      _
    $region25: #{autoencoder_forward.1} parent=1 // pred_fallthru
      _
    // Predicated region
    $region26: #{autoencoder_forward.1} parent=1 // pred_check
      _
    $region27: #{autoencoder_forward.1} parent=1 // pred_check_branch
      %42 = sbr.rel (0) target = $region29
    $region28: #{autoencoder_forward.1} parent=1 // pred_region
      _
    $region29: #{autoencoder_forward.1} parent=1 // pred_fallthru
      _
    // Predicated region
    $region30: #{autoencoder_forward.1} parent=1 // pred_check
      _
    $region31: #{autoencoder_forward.1} parent=1 // pred_check_branch
      %44 = sbr.rel (0) target = $region33
    $region32: #{autoencoder_forward.1} parent=1 // pred_region
      %46 = vsyncadd [#allocation5], 0
      %s47 = sshll.u32 %s7, 4
      %s48 = int_to_ptr.hbm [resolvable:$true] %s47
      %s49 = sshll.u32 [#allocation4], 4
      %s50 = int_to_ptr.vmem [resolvable:$true] %s49
      %55 = dma.hbm_to_vmem [thread:$0]  %s48, 8192, %s50, [#allocation5], 512, 512, 32
    $region33: #{autoencoder_forward.1} parent=1 // pred_fallthru
      _
    // Predicated region
    $region34: #{autoencoder_forward.1} parent=1 // pred_check
      _
    $region35: #{autoencoder_forward.1} parent=1 // pred_check_branch
      %57 = sbr.rel (0) target = $region37
    $region36: #{autoencoder_forward.1} parent=1 // pred_region
      _
    $region37: #{autoencoder_forward.1} parent=1 // pred_fallthru
      _
    // Predicated region
    $region38: #{autoencoder_forward.1} parent=1 // pred_check
      _
    $region39: #{autoencoder_forward.1} parent=1 // pred_check_branch
      %59 = sbr.rel (0) target = $region41
    $region40: #{autoencoder_forward.1} parent=1 // pred_region
      %61 = dma.done [#allocation3], 8192
    $region41: #{autoencoder_forward.1} parent=1 // pred_fallthru
      _
    // Predicated region
    $region42: #{autoencoder_forward.1} parent=1 // pred_check
      _
    $region43: #{autoencoder_forward.1} parent=1 // pred_check_branch
      %63 = sbr.rel (0) target = $region45
    $region44: #{autoencoder_forward.1} parent=1 // pred_region
      %65 = dma.done [#allocation5], 8192
    $region45: #{autoencoder_forward.1} parent=1 // pred_fallthru
      _
    %v66 = vld [vmem:[%s0] sm:$0xff]
    %v67 = vld [vmem:[%s0 + $0x8] sm:$0xff]
    %v68 = vld [vmem:[%s0 + $0x10] sm:$0xff]
    %v69 = vld [vmem:[%s0 + $0x18] sm:$0xff]
    %v70 = vld [vmem:[%s0 + $0x20] sm:$0xff]
    %v71 = vld [vmem:[%s0 + $0x28] sm:$0xff]
    %v72 = vld [vmem:[%s0 + $0x30] sm:$0xff]
    %v73 = vld [vmem:[%s0 + $0x38] sm:$0xff]
    %v74 = vld [vmem:[%s0 + $0x40] sm:$0xff]
    %v75 = vld [vmem:[%s0 + $0x48] sm:$0xff]
    %v76 = vld [vmem:[%s0 + $0x50] sm:$0xff]
    %v77 = vld [vmem:[%s0 + $0x58] sm:$0xff]
    %v78 = vld [vmem:[%s0 + $0x60] sm:$0xff]
    %v79 = vld [vmem:[%s0 + $0x68] sm:$0xff]
    %v80 = vld [vmem:[%s0 + $0x70] sm:$0xff]
    %v81 = vld [vmem:[%s0 + $0x78] sm:$0xff]
    %v82 = vpack.c.bf16 %v74, %v66
    %v83 = vpack.c.bf16 %v75, %v67
    %v84 = vpack.c.bf16 %v76, %v68
    %v85 = vpack.c.bf16 %v77, %v69
    %v86 = vpack.c.bf16 %v78, %v70
    %v87 = vpack.c.bf16 %v79, %v71
    %v88 = vpack.c.bf16 %v80, %v72
    %v89 = vpack.c.bf16 %v81, %v73
    %v90 = vld [vmem:[#allocation2] sm:$0xf]
    %v91 = vld [vmem:[#allocation2 + $0x4] sm:$0xf]
    %v92 = vld [vmem:[#allocation2 + $0x8] sm:$0xf]
    %v93 = vld [vmem:[#allocation2 + $0xc] sm:$0xf]
    %v94 = vld [vmem:[#allocation2 + $0x10] sm:$0xf]
    %v95 = vld [vmem:[#allocation2 + $0x14] sm:$0xf]
    %v96 = vld [vmem:[#allocation2 + $0x18] sm:$0xf]
    %v97 = vld [vmem:[#allocation2 + $0x1c] sm:$0xf]
    %v98 = vld [vmem:[#allocation2 + $0x20] sm:$0xf]
    %v99 = vld [vmem:[#allocation2 + $0x24] sm:$0xf]
    %v100 = vld [vmem:[#allocation2 + $0x28] sm:$0xf]
    %v101 = vld [vmem:[#allocation2 + $0x2c] sm:$0xf]
    %v102 = vld [vmem:[#allocation2 + $0x30] sm:$0xf]
    %v103 = vld [vmem:[#allocation2 + $0x34] sm:$0xf]
    %v104 = vld [vmem:[#allocation2 + $0x38] sm:$0xf]
    %v105 = vld [vmem:[#allocation2 + $0x3c] sm:$0xf]
    %v106 = vld [vmem:[#allocation2 + $0x40] sm:$0xf]
    %v107 = vld [vmem:[#allocation2 + $0x44] sm:$0xf]
    %v108 = vld [vmem:[#allocation2 + $0x48] sm:$0xf]
    %v109 = vld [vmem:[#allocation2 + $0x4c] sm:$0xf]
    %v110 = vld [vmem:[#allocation2 + $0x50] sm:$0xf]
    %v111 = vld [vmem:[#allocation2 + $0x54] sm:$0xf]
    %v112 = vld [vmem:[#allocation2 + $0x58] sm:$0xf]
    %v113 = vld [vmem:[#allocation2 + $0x5c] sm:$0xf]
    %v114 = vld [vmem:[#allocation2 + $0x60] sm:$0xf]
    %v115 = vld [vmem:[#allocation2 + $0x64] sm:$0xf]
    %v116 = vld [vmem:[#allocation2 + $0x68] sm:$0xf]
    %v117 = vld [vmem:[#allocation2 + $0x6c] sm:$0xf]
    %v118 = vld [vmem:[#allocation2 + $0x70] sm:$0xf]
    %v119 = vld [vmem:[#allocation2 + $0x74] sm:$0xf]
    %v120 = vld [vmem:[#allocation2 + $0x78] sm:$0xf]
    %v121 = vld [vmem:[#allocation2 + $0x7c] sm:$0xf]
    %v122 = vld [vmem:[#allocation2 + $0x80] sm:$0xf]
    %v123 = vld [vmem:[#allocation2 + $0x84] sm:$0xf]
    %v124 = vld [vmem:[#allocation2 + $0x88] sm:$0xf]
    %v125 = vld [vmem:[#allocation2 + $0x8c] sm:$0xf]
    %v126 = vld [vmem:[#allocation2 + $0x90] sm:$0xf]
    %v127 = vld [vmem:[#allocation2 + $0x94] sm:$0xf]
    %v128 = vld [vmem:[#allocation2 + $0x98] sm:$0xf]
    %v129 = vld [vmem:[#allocation2 + $0x9c] sm:$0xf]
    %v130 = vld [vmem:[#allocation2 + $0xa0] sm:$0xf]
    %v131 = vld [vmem:[#allocation2 + $0xa4] sm:$0xf]
    %v132 = vld [vmem:[#allocation2 + $0xa8] sm:$0xf]
    %v133 = vld [vmem:[#allocation2 + $0xac] sm:$0xf]
    %v134 = vld [vmem:[#allocation2 + $0xb0] sm:$0xf]
    %v135 = vld [vmem:[#allocation2 + $0xb4] sm:$0xf]
    %v136 = vld [vmem:[#allocation2 + $0xb8] sm:$0xf]
    %v137 = vld [vmem:[#allocation2 + $0xbc] sm:$0xf]
    %v138 = vld [vmem:[#allocation2 + $0xc0] sm:$0xf]
    %v139 = vld [vmem:[#allocation2 + $0xc4] sm:$0xf]
    %v140 = vld [vmem:[#allocation2 + $0xc8] sm:$0xf]
    %v141 = vld [vmem:[#allocation2 + $0xcc] sm:$0xf]
    %v142 = vld [vmem:[#allocation2 + $0xd0] sm:$0xf]
    %v143 = vld [vmem:[#allocation2 + $0xd4] sm:$0xf]
    %v144 = vld [vmem:[#allocation2 + $0xd8] sm:$0xf]
    %v145 = vld [vmem:[#allocation2 + $0xdc] sm:$0xf]
    %v146 = vld [vmem:[#allocation2 + $0xe0] sm:$0xf]
    %v147 = vld [vmem:[#allocation2 + $0xe4] sm:$0xf]
    %v148 = vld [vmem:[#allocation2 + $0xe8] sm:$0xf]
    %v149 = vld [vmem:[#allocation2 + $0xec] sm:$0xf]
    %v150 = vld [vmem:[#allocation2 + $0xf0] sm:$0xf]
    %v151 = vld [vmem:[#allocation2 + $0xf4] sm:$0xf]
    %v152 = vld [vmem:[#allocation2 + $0xf8] sm:$0xf]
    %v153 = vld [vmem:[#allocation2 + $0xfc] sm:$0xf]
    %v154 = vld [vmem:[#allocation2 + $0x100] sm:$0xf]
    %v155 = vld [vmem:[#allocation2 + $0x104] sm:$0xf]
    %v156 = vld [vmem:[#allocation2 + $0x108] sm:$0xf]
    %v157 = vld [vmem:[#allocation2 + $0x10c] sm:$0xf]
    %v158 = vld [vmem:[#allocation2 + $0x110] sm:$0xf]
    %v159 = vld [vmem:[#allocation2 + $0x114] sm:$0xf]
    %v160 = vld [vmem:[#allocation2 + $0x118] sm:$0xf]
    %v161 = vld [vmem:[#allocation2 + $0x11c] sm:$0xf]
    %v162 = vld [vmem:[#allocation2 + $0x120] sm:$0xf]
    %v163 = vld [vmem:[#allocation2 + $0x124] sm:$0xf]
    %v164 = vld [vmem:[#allocation2 + $0x128] sm:$0xf]
    %v165 = vld [vmem:[#allocation2 + $0x12c] sm:$0xf]
    %v166 = vld [vmem:[#allocation2 + $0x130] sm:$0xf]
    %v167 = vld [vmem:[#allocation2 + $0x134] sm:$0xf]
    %v168 = vld [vmem:[#allocation2 + $0x138] sm:$0xf]
    %v169 = vld [vmem:[#allocation2 + $0x13c] sm:$0xf]
    %v170 = vld [vmem:[#allocation2 + $0x140] sm:$0xf]
    %v171 = vld [vmem:[#allocation2 + $0x144] sm:$0xf]
    %v172 = vld [vmem:[#allocation2 + $0x148] sm:$0xf]
    %v173 = vld [vmem:[#allocation2 + $0x14c] sm:$0xf]
    %v174 = vld [vmem:[#allocation2 + $0x150] sm:$0xf]
    %v175 = vld [vmem:[#allocation2 + $0x154] sm:$0xf]
    %v176 = vld [vmem:[#allocation2 + $0x158] sm:$0xf]
    %v177 = vld [vmem:[#allocation2 + $0x15c] sm:$0xf]
    %v178 = vld [vmem:[#allocation2 + $0x160] sm:$0xf]
    %v179 = vld [vmem:[#allocation2 + $0x164] sm:$0xf]
    %v180 = vld [vmem:[#allocation2 + $0x168] sm:$0xf]
    %v181 = vld [vmem:[#allocation2 + $0x16c] sm:$0xf]
    %v182 = vld [vmem:[#allocation2 + $0x170] sm:$0xf]
    %v183 = vld [vmem:[#allocation2 + $0x174] sm:$0xf]
    %v184 = vld [vmem:[#allocation2 + $0x178] sm:$0xf]
    %v185 = vld [vmem:[#allocation2 + $0x17c] sm:$0xf]
    %v186 = vld [vmem:[#allocation2 + $0x180] sm:$0xf]
    %v187 = vld [vmem:[#allocation2 + $0x184] sm:$0xf]
    %v188 = vld [vmem:[#allocation2 + $0x188] sm:$0xf]
    %v189 = vld [vmem:[#allocation2 + $0x18c] sm:$0xf]
    %v190 = vld [vmem:[#allocation2 + $0x190] sm:$0xf]
    %v191 = vld [vmem:[#allocation2 + $0x194] sm:$0xf]
    %v192 = vld [vmem:[#allocation2 + $0x198] sm:$0xf]
    %v193 = vld [vmem:[#allocation2 + $0x19c] sm:$0xf]
    %v194 = vld [vmem:[#allocation2 + $0x1a0] sm:$0xf]
    %v195 = vld [vmem:[#allocation2 + $0x1a4] sm:$0xf]
    %v196 = vld [vmem:[#allocation2 + $0x1a8] sm:$0xf]
    %v197 = vld [vmem:[#allocation2 + $0x1ac] sm:$0xf]
    %v198 = vld [vmem:[#allocation2 + $0x1b0] sm:$0xf]
    %v199 = vld [vmem:[#allocation2 + $0x1b4] sm:$0xf]
    %v200 = vld [vmem:[#allocation2 + $0x1b8] sm:$0xf]
    %v201 = vld [vmem:[#allocation2 + $0x1bc] sm:$0xf]
    %v202 = vld [vmem:[#allocation2 + $0x1c0] sm:$0xf]
    %v203 = vld [vmem:[#allocation2 + $0x1c4] sm:$0xf]
    %v204 = vld [vmem:[#allocation2 + $0x1c8] sm:$0xf]
    %v205 = vld [vmem:[#allocation2 + $0x1cc] sm:$0xf]
    %v206 = vld [vmem:[#allocation2 + $0x1d0] sm:$0xf]
    %v207 = vld [vmem:[#allocation2 + $0x1d4] sm:$0xf]
    %v208 = vld [vmem:[#allocation2 + $0x1d8] sm:$0xf]
    %v209 = vld [vmem:[#allocation2 + $0x1dc] sm:$0xf]
    %v210 = vld [vmem:[#allocation2 + $0x1e0] sm:$0xf]
    %v211 = vld [vmem:[#allocation2 + $0x1e4] sm:$0xf]
    %v212 = vld [vmem:[#allocation2 + $0x1e8] sm:$0xf]
    %v213 = vld [vmem:[#allocation2 + $0x1ec] sm:$0xf]
    %v214 = vld [vmem:[#allocation2 + $0x1f0] sm:$0xf]
    %v215 = vld [vmem:[#allocation2 + $0x1f4] sm:$0xf]
    %v216 = vld [vmem:[#allocation2 + $0x1f8] sm:$0xf]
    %v217 = vld [vmem:[#allocation2 + $0x1fc] sm:$0xf]
    %v218 = vld [vmem:[%s2] sm:$0x1]
    %v220 = vperm.slane %v218, 0
    %v350 = vunpack.c.l.b16 %v90
    %v351 = vunpack.c.l.b16 %v91
    %v352 = vunpack.c.l.b16 %v92
    %v353 = vunpack.c.l.b16 %v93
    %v354 = vunpack.c.l.b16 %v94
    %v355 = vunpack.c.l.b16 %v95
    %v356 = vunpack.c.l.b16 %v96
    %v357 = vunpack.c.l.b16 %v97
    %v358 = vunpack.c.l.b16 %v98
    %v359 = vunpack.c.l.b16 %v99
    %v360 = vunpack.c.l.b16 %v100
    %v361 = vunpack.c.l.b16 %v101
    %v362 = vunpack.c.l.b16 %v102
    %v363 = vunpack.c.l.b16 %v103
    %v364 = vunpack.c.l.b16 %v104
    %v365 = vunpack.c.l.b16 %v105
    %v366 = vunpack.c.l.b16 %v106
    %v367 = vunpack.c.l.b16 %v107
    %v368 = vunpack.c.l.b16 %v108
    %v369 = vunpack.c.l.b16 %v109
    %v370 = vunpack.c.l.b16 %v110
    %v371 = vunpack.c.l.b16 %v111
    %v372 = vunpack.c.l.b16 %v112
    %v373 = vunpack.c.l.b16 %v113
    %v374 = vunpack.c.l.b16 %v114
    %v375 = vunpack.c.l.b16 %v115
    %v376 = vunpack.c.l.b16 %v116
    %v377 = vunpack.c.l.b16 %v117
    %v378 = vunpack.c.l.b16 %v118
    %v379 = vunpack.c.l.b16 %v119
    %v380 = vunpack.c.l.b16 %v120
    %v381 = vunpack.c.l.b16 %v121
    %v382 = vunpack.c.l.b16 %v122
    %v383 = vunpack.c.l.b16 %v123
    %v384 = vunpack.c.l.b16 %v124
    %v385 = vunpack.c.l.b16 %v125
    %v386 = vunpack.c.l.b16 %v126
    %v387 = vunpack.c.l.b16 %v127
    %v388 = vunpack.c.l.b16 %v128
    %v389 = vunpack.c.l.b16 %v129
    %v390 = vunpack.c.l.b16 %v130
    %v391 = vunpack.c.l.b16 %v131
    %v392 = vunpack.c.l.b16 %v132
    %v393 = vunpack.c.l.b16 %v133
    %v394 = vunpack.c.l.b16 %v134
    %v395 = vunpack.c.l.b16 %v135
    %v396 = vunpack.c.l.b16 %v136
    %v397 = vunpack.c.l.b16 %v137
    %v398 = vunpack.c.l.b16 %v138
    %v399 = vunpack.c.l.b16 %v139
    %v400 = vunpack.c.l.b16 %v140
    %v401 = vunpack.c.l.b16 %v141
    %v402 = vunpack.c.l.b16 %v142
    %v403 = vunpack.c.l.b16 %v143
    %v404 = vunpack.c.l.b16 %v144
    %v405 = vunpack.c.l.b16 %v145
    %v406 = vunpack.c.l.b16 %v146
    %v407 = vunpack.c.l.b16 %v147
    %v408 = vunpack.c.l.b16 %v148
    %v409 = vunpack.c.l.b16 %v149
    %v410 = vunpack.c.l.b16 %v150
    %v411 = vunpack.c.l.b16 %v151
    %v412 = vunpack.c.l.b16 %v152
    %v413 = vunpack.c.l.b16 %v153
    %v414 = vunpack.c.l.b16 %v154
    %v415 = vunpack.c.l.b16 %v155
    %v416 = vunpack.c.l.b16 %v156
    %v417 = vunpack.c.l.b16 %v157
    %v418 = vunpack.c.l.b16 %v158
    %v419 = vunpack.c.l.b16 %v159
    %v420 = vunpack.c.l.b16 %v160
    %v421 = vunpack.c.l.b16 %v161
    %v422 = vunpack.c.l.b16 %v162
    %v423 = vunpack.c.l.b16 %v163
    %v424 = vunpack.c.l.b16 %v164
    %v425 = vunpack.c.l.b16 %v165
    %v426 = vunpack.c.l.b16 %v166
    %v427 = vunpack.c.l.b16 %v167
    %v428 = vunpack.c.l.b16 %v168
    %v429 = vunpack.c.l.b16 %v169
    %v430 = vunpack.c.l.b16 %v170
    %v431 = vunpack.c.l.b16 %v171
    %v432 = vunpack.c.l.b16 %v172
    %v433 = vunpack.c.l.b16 %v173
    %v434 = vunpack.c.l.b16 %v174
    %v435 = vunpack.c.l.b16 %v175
    %v436 = vunpack.c.l.b16 %v176
    %v437 = vunpack.c.l.b16 %v177
    %v438 = vunpack.c.l.b16 %v178
    %v439 = vunpack.c.l.b16 %v179
    %v440 = vunpack.c.l.b16 %v180
    %v441 = vunpack.c.l.b16 %v181
    %v442 = vunpack.c.l.b16 %v182
    %v443 = vunpack.c.l.b16 %v183
    %v444 = vunpack.c.l.b16 %v184
    %v445 = vunpack.c.l.b16 %v185
    %v446 = vunpack.c.l.b16 %v186
    %v447 = vunpack.c.l.b16 %v187
    %v448 = vunpack.c.l.b16 %v188
    %v449 = vunpack.c.l.b16 %v189
    %v450 = vunpack.c.l.b16 %v190
    %v451 = vunpack.c.l.b16 %v191
    %v452 = vunpack.c.l.b16 %v192
    %v453 = vunpack.c.l.b16 %v193
    %v454 = vunpack.c.l.b16 %v194
    %v455 = vunpack.c.l.b16 %v195
    %v456 = vunpack.c.l.b16 %v196
    %v457 = vunpack.c.l.b16 %v197
    %v458 = vunpack.c.l.b16 %v198
    %v459 = vunpack.c.l.b16 %v199
    %v460 = vunpack.c.l.b16 %v200
    %v461 = vunpack.c.l.b16 %v201
    %v462 = vunpack.c.l.b16 %v202
    %v463 = vunpack.c.l.b16 %v203
    %v464 = vunpack.c.l.b16 %v204
    %v465 = vunpack.c.l.b16 %v205
    %v466 = vunpack.c.l.b16 %v206
    %v467 = vunpack.c.l.b16 %v207
    %v468 = vunpack.c.l.b16 %v208
    %v469 = vunpack.c.l.b16 %v209
    %v470 = vunpack.c.l.b16 %v210
    %v471 = vunpack.c.l.b16 %v211
    %v472 = vunpack.c.l.b16 %v212
    %v473 = vunpack.c.l.b16 %v213
    %v474 = vunpack.c.l.b16 %v214
    %v475 = vunpack.c.l.b16 %v215
    %v476 = vunpack.c.l.b16 %v216
    %v477 = vunpack.c.l.b16 %v217
    %v478 = vpack.c.b16 %v351, %v350
    %v479 = vpack.c.b16 %v353, %v352
    %v480 = vpack.c.b16 %v355, %v354
    %v481 = vpack.c.b16 %v357, %v356
    %v482 = vpack.c.b16 %v359, %v358
    %v483 = vpack.c.b16 %v361, %v360
    %v484 = vpack.c.b16 %v363, %v362
    %v485 = vpack.c.b16 %v365, %v364
    %v486 = vpack.c.b16 %v367, %v366
    %v487 = vpack.c.b16 %v369, %v368
    %v488 = vpack.c.b16 %v371, %v370
    %v489 = vpack.c.b16 %v373, %v372
    %v490 = vpack.c.b16 %v375, %v374
    %v491 = vpack.c.b16 %v377, %v376
    %v492 = vpack.c.b16 %v379, %v378
    %v493 = vpack.c.b16 %v381, %v380
    %v494 = vpack.c.b16 %v383, %v382
    %v495 = vpack.c.b16 %v385, %v384
    %v496 = vpack.c.b16 %v387, %v386
    %v497 = vpack.c.b16 %v389, %v388
    %v498 = vpack.c.b16 %v391, %v390
    %v499 = vpack.c.b16 %v393, %v392
    %v500 = vpack.c.b16 %v395, %v394
    %v501 = vpack.c.b16 %v397, %v396
    %v502 = vpack.c.b16 %v399, %v398
    %v503 = vpack.c.b16 %v401, %v400
    %v504 = vpack.c.b16 %v403, %v402
    %v505 = vpack.c.b16 %v405, %v404
    %v506 = vpack.c.b16 %v407, %v406
    %v507 = vpack.c.b16 %v409, %v408
    %v508 = vpack.c.b16 %v411, %v410
    %v509 = vpack.c.b16 %v413, %v412
    %v510 = vpack.c.b16 %v415, %v414
    %v511 = vpack.c.b16 %v417, %v416
    %v512 = vpack.c.b16 %v419, %v418
    %v513 = vpack.c.b16 %v421, %v420
    %v514 = vpack.c.b16 %v423, %v422
    %v515 = vpack.c.b16 %v425, %v424
    %v516 = vpack.c.b16 %v427, %v426
    %v517 = vpack.c.b16 %v429, %v428
    %v518 = vpack.c.b16 %v431, %v430
    %v519 = vpack.c.b16 %v433, %v432
    %v520 = vpack.c.b16 %v435, %v434
    %v521 = vpack.c.b16 %v437, %v436
    %v522 = vpack.c.b16 %v439, %v438
    %v523 = vpack.c.b16 %v441, %v440
    %v524 = vpack.c.b16 %v443, %v442
    %v525 = vpack.c.b16 %v445, %v444
    %v526 = vpack.c.b16 %v447, %v446
    %v527 = vpack.c.b16 %v449, %v448
    %v528 = vpack.c.b16 %v451, %v450
    %v529 = vpack.c.b16 %v453, %v452
    %v530 = vpack.c.b16 %v455, %v454
    %v531 = vpack.c.b16 %v457, %v456
    %v532 = vpack.c.b16 %v459, %v458
    %v533 = vpack.c.b16 %v461, %v460
    %v534 = vpack.c.b16 %v463, %v462
    %v535 = vpack.c.b16 %v465, %v464
    %v536 = vpack.c.b16 %v467, %v466
    %v537 = vpack.c.b16 %v469, %v468
    %v538 = vpack.c.b16 %v471, %v470
    %v539 = vpack.c.b16 %v473, %v472
    %v540 = vpack.c.b16 %v475, %v474
    %v541 = vpack.c.b16 %v477, %v476
    %606 = vmatpush.bf16.msra.mxu0 %v485
    %607 = vmatpush.bf16.msra.mxu0 %v484
    %608 = vmatpush.bf16.msra.mxu0 %v483
    %609 = vmatpush.bf16.msra.mxu0 %v482
    %610 = vmatpush.bf16.msra.mxu0 %v481
    %611 = vmatpush.bf16.msra.mxu0 %v480
    %612 = vmatpush.bf16.msra.mxu0 %v479
    %613 = vmatpush.bf16.msra.mxu0 %v478
    %614 = vmatmul.bf16.gmra.mxu0 %v82
    %v615 = vpop.f32.mrf.mxu0
    %v616 = vadd.f32 %v220, %v615
    %v617 = vpop.f32.mrf.mxu0
    %v618 = vadd.f32 %v220, %v617
    %619 = vdwg.mxu0
    %620 = vmatpush.bf16.msra.mxu0 %v493
    %621 = vmatpush.bf16.msra.mxu0 %v492
    %622 = vmatpush.bf16.msra.mxu0 %v491
    %623 = vmatpush.bf16.msra.mxu0 %v490
    %624 = vmatpush.bf16.msra.mxu0 %v489
    %625 = vmatpush.bf16.msra.mxu0 %v488
    %626 = vmatpush.bf16.msra.mxu0 %v487
    %627 = vmatpush.bf16.msra.mxu0 %v486
    %628 = vmatmul.bf16.gmra.mxu0 %v83
    %v629 = vpop.f32.mrf.mxu0
    %v630 = vadd.f32 %v616, %v629
    %v631 = vpop.f32.mrf.mxu0
    %v632 = vadd.f32 %v618, %v631
    %633 = vdwg.mxu0
    %634 = vmatpush.bf16.msra.mxu0 %v501
    %635 = vmatpush.bf16.msra.mxu0 %v500
    %636 = vmatpush.bf16.msra.mxu0 %v499
    %637 = vmatpush.bf16.msra.mxu0 %v498
    %638 = vmatpush.bf16.msra.mxu0 %v497
    %639 = vmatpush.bf16.msra.mxu0 %v496
    %640 = vmatpush.bf16.msra.mxu0 %v495
    %641 = vmatpush.bf16.msra.mxu0 %v494
    %642 = vmatmul.bf16.gmra.mxu0 %v84
    %v643 = vpop.f32.mrf.mxu0
    %v644 = vadd.f32 %v630, %v643
    %v645 = vpop.f32.mrf.mxu0
    %v646 = vadd.f32 %v632, %v645
    %647 = vdwg.mxu0
    %648 = vmatpush.bf16.msra.mxu0 %v509
    %649 = vmatpush.bf16.msra.mxu0 %v508
    %650 = vmatpush.bf16.msra.mxu0 %v507
    %651 = vmatpush.bf16.msra.mxu0 %v506
    %652 = vmatpush.bf16.msra.mxu0 %v505
    %653 = vmatpush.bf16.msra.mxu0 %v504
    %654 = vmatpush.bf16.msra.mxu0 %v503
    %655 = vmatpush.bf16.msra.mxu0 %v502
    %656 = vmatmul.bf16.gmra.mxu0 %v85
    %v657 = vpop.f32.mrf.mxu0
    %v658 = vadd.f32 %v644, %v657
    %v659 = vpop.f32.mrf.mxu0
    %v660 = vadd.f32 %v646, %v659
    %661 = vdwg.mxu0
    %662 = vmatpush.bf16.msra.mxu0 %v517
    %663 = vmatpush.bf16.msra.mxu0 %v516
    %664 = vmatpush.bf16.msra.mxu0 %v515
    %665 = vmatpush.bf16.msra.mxu0 %v514
    %666 = vmatpush.bf16.msra.mxu0 %v513
    %667 = vmatpush.bf16.msra.mxu0 %v512
    %668 = vmatpush.bf16.msra.mxu0 %v511
    %669 = vmatpush.bf16.msra.mxu0 %v510
    %670 = vmatmul.bf16.gmra.mxu0 %v86
    %v671 = vpop.f32.mrf.mxu0
    %v672 = vadd.f32 %v658, %v671
    %v673 = vpop.f32.mrf.mxu0
    %v674 = vadd.f32 %v660, %v673
    %675 = vdwg.mxu0
    %676 = vmatpush.bf16.msra.mxu0 %v525
    %677 = vmatpush.bf16.msra.mxu0 %v524
    %678 = vmatpush.bf16.msra.mxu0 %v523
    %679 = vmatpush.bf16.msra.mxu0 %v522
    %680 = vmatpush.bf16.msra.mxu0 %v521
    %681 = vmatpush.bf16.msra.mxu0 %v520
    %682 = vmatpush.bf16.msra.mxu0 %v519
    %683 = vmatpush.bf16.msra.mxu0 %v518
    %684 = vmatmul.bf16.gmra.mxu0 %v87
    %v685 = vpop.f32.mrf.mxu0
    %v686 = vadd.f32 %v672, %v685
    %v687 = vpop.f32.mrf.mxu0
    %v688 = vadd.f32 %v674, %v687
    %689 = vdwg.mxu0
    %690 = vmatpush.bf16.msra.mxu0 %v533
    %691 = vmatpush.bf16.msra.mxu0 %v532
    %692 = vmatpush.bf16.msra.mxu0 %v531
    %693 = vmatpush.bf16.msra.mxu0 %v530
    %694 = vmatpush.bf16.msra.mxu0 %v529
    %695 = vmatpush.bf16.msra.mxu0 %v528
    %696 = vmatpush.bf16.msra.mxu0 %v527
    %697 = vmatpush.bf16.msra.mxu0 %v526
    %698 = vmatmul.bf16.gmra.mxu0 %v88
    %v699 = vpop.f32.mrf.mxu0
    %v700 = vadd.f32 %v686, %v699
    %v701 = vpop.f32.mrf.mxu0
    %v702 = vadd.f32 %v688, %v701
    %703 = vdwg.mxu0
    %704 = vmatpush.bf16.msra.mxu0 %v541
    %705 = vmatpush.bf16.msra.mxu0 %v540
    %706 = vmatpush.bf16.msra.mxu0 %v539
    %707 = vmatpush.bf16.msra.mxu0 %v538
    %708 = vmatpush.bf16.msra.mxu0 %v537
    %709 = vmatpush.bf16.msra.mxu0 %v536
    %710 = vmatpush.bf16.msra.mxu0 %v535
    %711 = vmatpush.bf16.msra.mxu0 %v534
    %712 = vmatmul.bf16.gmra.mxu0 %v89
    %v713 = vpop.f32.mrf.mxu0
    %v714 = vadd.f32 %v700, %v713
    %v715 = vpop.f32.mrf.mxu0
    %v716 = vadd.f32 %v702, %v715
    %717 = vdwg.mxu0
    %v718 = vmax.f32 %v714, 0.0
    %v719 = vmax.f32 %v716, 0.0
    %v720 = vpack.c.bf16 %v719, %v718
    %v721 = vld [vmem:[%s3] sm:$0xf]
    %v722 = vld [vmem:[%s3 + $0x4] sm:$0xf]
    %v723 = vld [vmem:[%s3 + $0x8] sm:$0xf]
    %v724 = vld [vmem:[%s3 + $0xc] sm:$0xf]
    %v725 = vld [vmem:[%s3 + $0x10] sm:$0xf]
    %v726 = vld [vmem:[%s3 + $0x14] sm:$0xf]
    %v727 = vld [vmem:[%s3 + $0x18] sm:$0xf]
    %v728 = vld [vmem:[%s3 + $0x1c] sm:$0xf]
    %v729 = vld [vmem:[%s3 + $0x20] sm:$0xf]
    %v730 = vld [vmem:[%s3 + $0x24] sm:$0xf]
    %v731 = vld [vmem:[%s3 + $0x28] sm:$0xf]
    %v732 = vld [vmem:[%s3 + $0x2c] sm:$0xf]
    %v733 = vld [vmem:[%s3 + $0x30] sm:$0xf]
    %v734 = vld [vmem:[%s3 + $0x34] sm:$0xf]
    %v735 = vld [vmem:[%s3 + $0x38] sm:$0xf]
    %v736 = vld [vmem:[%s3 + $0x3c] sm:$0xf]
    %v737 = vld [vmem:[%s4] sm:$0x1]
    %v739 = vperm.slane %v737, 0
    %v757 = vunpack.c.l.b16 %v721
    %v758 = vunpack.c.l.b16 %v722
    %v759 = vunpack.c.l.b16 %v723
    %v760 = vunpack.c.l.b16 %v724
    %v761 = vunpack.c.l.b16 %v725
    %v762 = vunpack.c.l.b16 %v726
    %v763 = vunpack.c.l.b16 %v727
    %v764 = vunpack.c.l.b16 %v728
    %v765 = vunpack.c.l.b16 %v729
    %v766 = vunpack.c.l.b16 %v730
    %v767 = vunpack.c.l.b16 %v731
    %v768 = vunpack.c.l.b16 %v732
    %v769 = vunpack.c.l.b16 %v733
    %v770 = vunpack.c.l.b16 %v734
    %v771 = vunpack.c.l.b16 %v735
    %v772 = vunpack.c.l.b16 %v736
    %v773 = vpack.c.b16 %v758, %v757
    %v774 = vpack.c.b16 %v760, %v759
    %v775 = vpack.c.b16 %v762, %v761
    %v776 = vpack.c.b16 %v764, %v763
    %v777 = vpack.c.b16 %v766, %v765
    %v778 = vpack.c.b16 %v768, %v767
    %v779 = vpack.c.b16 %v770, %v769
    %v780 = vpack.c.b16 %v772, %v771
    %789 = vmatpush.bf16.msra.mxu0 %v780
    %790 = vmatpush.bf16.msra.mxu0 %v779
    %791 = vmatpush.bf16.msra.mxu0 %v778
    %792 = vmatpush.bf16.msra.mxu0 %v777
    %793 = vmatpush.bf16.msra.mxu0 %v776
    %794 = vmatpush.bf16.msra.mxu0 %v775
    %795 = vmatpush.bf16.msra.mxu0 %v774
    %796 = vmatpush.bf16.msra.mxu0 %v773
    %797 = vmatmul.bf16.gmra.mxu0 %v720
    %v798 = vpop.f32.mrf.mxu0
    %v799 = vadd.f32 %v739, %v798
    %v800 = vpop.f32.mrf.mxu0
    %v801 = vadd.f32 %v739, %v800
    %802 = vdwg.mxu0
    %803 = vst [vmem:[%s9] sm:$0xff] %v799
    %804 = vst [vmem:[%s9 + $0x8] sm:$0xff] %v801
    %v805 = vpack.c.bf16 %v801, %v799
    %v806 = vld [vmem:[%s5] sm:$0xf]
    %v807 = vld [vmem:[%s5 + $0x4] sm:$0xf]
    %v808 = vld [vmem:[%s5 + $0x8] sm:$0xf]
    %v809 = vld [vmem:[%s5 + $0xc] sm:$0xf]
    %v810 = vld [vmem:[%s5 + $0x10] sm:$0xf]
    %v811 = vld [vmem:[%s5 + $0x14] sm:$0xf]
    %v812 = vld [vmem:[%s5 + $0x18] sm:$0xf]
    %v813 = vld [vmem:[%s5 + $0x1c] sm:$0xf]
    %v814 = vld [vmem:[%s5 + $0x20] sm:$0xf]
    %v815 = vld [vmem:[%s5 + $0x24] sm:$0xf]
    %v816 = vld [vmem:[%s5 + $0x28] sm:$0xf]
    %v817 = vld [vmem:[%s5 + $0x2c] sm:$0xf]
    %v818 = vld [vmem:[%s5 + $0x30] sm:$0xf]
    %v819 = vld [vmem:[%s5 + $0x34] sm:$0xf]
    %v820 = vld [vmem:[%s5 + $0x38] sm:$0xf]
    %v821 = vld [vmem:[%s5 + $0x3c] sm:$0xf]
    %v822 = vld [vmem:[%s6] sm:$0x1]
    %v824 = vperm.slane %v822, 0
    %v842 = vunpack.c.l.b16 %v806
    %v843 = vunpack.c.l.b16 %v807
    %v844 = vunpack.c.l.b16 %v808
    %v845 = vunpack.c.l.b16 %v809
    %v846 = vunpack.c.l.b16 %v810
    %v847 = vunpack.c.l.b16 %v811
    %v848 = vunpack.c.l.b16 %v812
    %v849 = vunpack.c.l.b16 %v813
    %v850 = vunpack.c.l.b16 %v814
    %v851 = vunpack.c.l.b16 %v815
    %v852 = vunpack.c.l.b16 %v816
    %v853 = vunpack.c.l.b16 %v817
    %v854 = vunpack.c.l.b16 %v818
    %v855 = vunpack.c.l.b16 %v819
    %v856 = vunpack.c.l.b16 %v820
    %v857 = vunpack.c.l.b16 %v821
    %v858 = vpack.c.b16 %v843, %v842
    %v859 = vpack.c.b16 %v845, %v844
    %v860 = vpack.c.b16 %v847, %v846
    %v861 = vpack.c.b16 %v849, %v848
    %v862 = vpack.c.b16 %v851, %v850
    %v863 = vpack.c.b16 %v853, %v852
    %v864 = vpack.c.b16 %v855, %v854
    %v865 = vpack.c.b16 %v857, %v856
    %874 = vmatpush.bf16.msra.mxu0 %v865
    %875 = vmatpush.bf16.msra.mxu0 %v864
    %876 = vmatpush.bf16.msra.mxu0 %v863
    %877 = vmatpush.bf16.msra.mxu0 %v862
    %878 = vmatpush.bf16.msra.mxu0 %v861
    %879 = vmatpush.bf16.msra.mxu0 %v860
    %880 = vmatpush.bf16.msra.mxu0 %v859
    %881 = vmatpush.bf16.msra.mxu0 %v858
    %882 = vmatmul.bf16.gmra.mxu0 %v805
    %v883 = vpop.f32.mrf.mxu0
    %v884 = vadd.f32 %v824, %v883
    %v885 = vpop.f32.mrf.mxu0
    %v886 = vadd.f32 %v824, %v885
    %887 = vdwg.mxu0
    %v888 = vmax.f32 %v884, 0.0
    %v889 = vmax.f32 %v886, 0.0
    %v890 = vpack.c.bf16 %v889, %v888
    %v891 = vld [vmem:[#allocation4] sm:$0xff]
    %v892 = vld [vmem:[#allocation4 + $0x8] sm:$0xff]
    %v893 = vld [vmem:[#allocation4 + $0x10] sm:$0xff]
    %v894 = vld [vmem:[#allocation4 + $0x18] sm:$0xff]
    %v895 = vld [vmem:[#allocation4 + $0x20] sm:$0xff]
    %v896 = vld [vmem:[#allocation4 + $0x28] sm:$0xff]
    %v897 = vld [vmem:[#allocation4 + $0x30] sm:$0xff]
    %v898 = vld [vmem:[#allocation4 + $0x38] sm:$0xff]
    %v899 = vld [vmem:[#allocation4 + $0x40] sm:$0xff]
    %v900 = vld [vmem:[#allocation4 + $0x48] sm:$0xff]
    %v901 = vld [vmem:[#allocation4 + $0x50] sm:$0xff]
    %v902 = vld [vmem:[#allocation4 + $0x58] sm:$0xff]
    %v903 = vld [vmem:[#allocation4 + $0x60] sm:$0xff]
    %v904 = vld [vmem:[#allocation4 + $0x68] sm:$0xff]
    %v905 = vld [vmem:[#allocation4 + $0x70] sm:$0xff]
    %v906 = vld [vmem:[#allocation4 + $0x78] sm:$0xff]
    %v907 = vld [vmem:[#allocation4 + $0x80] sm:$0xff]
    %v908 = vld [vmem:[#allocation4 + $0x88] sm:$0xff]
    %v909 = vld [vmem:[#allocation4 + $0x90] sm:$0xff]
    %v910 = vld [vmem:[#allocation4 + $0x98] sm:$0xff]
    %v911 = vld [vmem:[#allocation4 + $0xa0] sm:$0xff]
    %v912 = vld [vmem:[#allocation4 + $0xa8] sm:$0xff]
    %v913 = vld [vmem:[#allocation4 + $0xb0] sm:$0xff]
    %v914 = vld [vmem:[#allocation4 + $0xb8] sm:$0xff]
    %v915 = vld [vmem:[#allocation4 + $0xc0] sm:$0xff]
    %v916 = vld [vmem:[#allocation4 + $0xc8] sm:$0xff]
    %v917 = vld [vmem:[#allocation4 + $0xd0] sm:$0xff]
    %v918 = vld [vmem:[#allocation4 + $0xd8] sm:$0xff]
    %v919 = vld [vmem:[#allocation4 + $0xe0] sm:$0xff]
    %v920 = vld [vmem:[#allocation4 + $0xe8] sm:$0xff]
    %v921 = vld [vmem:[#allocation4 + $0xf0] sm:$0xff]
    %v922 = vld [vmem:[#allocation4 + $0xf8] sm:$0xff]
    %v923 = vld [vmem:[#allocation4 + $0x100] sm:$0xff]
    %v924 = vld [vmem:[#allocation4 + $0x108] sm:$0xff]
    %v925 = vld [vmem:[#allocation4 + $0x110] sm:$0xff]
    %v926 = vld [vmem:[#allocation4 + $0x118] sm:$0xff]
    %v927 = vld [vmem:[#allocation4 + $0x120] sm:$0xff]
    %v928 = vld [vmem:[#allocation4 + $0x128] sm:$0xff]
    %v929 = vld [vmem:[#allocation4 + $0x130] sm:$0xff]
    %v930 = vld [vmem:[#allocation4 + $0x138] sm:$0xff]
    %v931 = vld [vmem:[#allocation4 + $0x140] sm:$0xff]
    %v932 = vld [vmem:[#allocation4 + $0x148] sm:$0xff]
    %v933 = vld [vmem:[#allocation4 + $0x150] sm:$0xff]
    %v934 = vld [vmem:[#allocation4 + $0x158] sm:$0xff]
    %v935 = vld [vmem:[#allocation4 + $0x160] sm:$0xff]
    %v936 = vld [vmem:[#allocation4 + $0x168] sm:$0xff]
    %v937 = vld [vmem:[#allocation4 + $0x170] sm:$0xff]
    %v938 = vld [vmem:[#allocation4 + $0x178] sm:$0xff]
    %v939 = vld [vmem:[#allocation4 + $0x180] sm:$0xff]
    %v940 = vld [vmem:[#allocation4 + $0x188] sm:$0xff]
    %v941 = vld [vmem:[#allocation4 + $0x190] sm:$0xff]
    %v942 = vld [vmem:[#allocation4 + $0x198] sm:$0xff]
    %v943 = vld [vmem:[#allocation4 + $0x1a0] sm:$0xff]
    %v944 = vld [vmem:[#allocation4 + $0x1a8] sm:$0xff]
    %v945 = vld [vmem:[#allocation4 + $0x1b0] sm:$0xff]
    %v946 = vld [vmem:[#allocation4 + $0x1b8] sm:$0xff]
    %v947 = vld [vmem:[#allocation4 + $0x1c0] sm:$0xff]
    %v948 = vld [vmem:[#allocation4 + $0x1c8] sm:$0xff]
    %v949 = vld [vmem:[#allocation4 + $0x1d0] sm:$0xff]
    %v950 = vld [vmem:[#allocation4 + $0x1d8] sm:$0xff]
    %v951 = vld [vmem:[#allocation4 + $0x1e0] sm:$0xff]
    %v952 = vld [vmem:[#allocation4 + $0x1e8] sm:$0xff]
    %v953 = vld [vmem:[#allocation4 + $0x1f0] sm:$0xff]
    %v954 = vld [vmem:[#allocation4 + $0x1f8] sm:$0xff]
    %v955 = vld [vmem:[%s8] sm:$0xff]
    %v957 = vperm.slane %v955, 0
    %v958 = vperm.slane %v955, 1
    %v959 = vperm.slane %v955, 2
    %v960 = vperm.slane %v955, 3
    %v961 = vperm.slane %v955, 4
    %v962 = vperm.slane %v955, 5
    %v963 = vperm.slane %v955, 6
    %v964 = vperm.slane %v955, 7
    %v1037 = vunpack.c.l.b16 %v891
    %v1038 = vunpack.c.h.b16 %v891
    %v1039 = vunpack.c.l.b16 %v892
    %v1040 = vunpack.c.h.b16 %v892
    %v1041 = vunpack.c.l.b16 %v893
    %v1042 = vunpack.c.h.b16 %v893
    %v1043 = vunpack.c.l.b16 %v894
    %v1044 = vunpack.c.h.b16 %v894
    %v1045 = vunpack.c.l.b16 %v895
    %v1046 = vunpack.c.h.b16 %v895
    %v1047 = vunpack.c.l.b16 %v896
    %v1048 = vunpack.c.h.b16 %v896
    %v1049 = vunpack.c.l.b16 %v897
    %v1050 = vunpack.c.h.b16 %v897
    %v1051 = vunpack.c.l.b16 %v898
    %v1052 = vunpack.c.h.b16 %v898
    %v1053 = vunpack.c.l.b16 %v899
    %v1054 = vunpack.c.h.b16 %v899
    %v1055 = vunpack.c.l.b16 %v900
    %v1056 = vunpack.c.h.b16 %v900
    %v1057 = vunpack.c.l.b16 %v901
    %v1058 = vunpack.c.h.b16 %v901
    %v1059 = vunpack.c.l.b16 %v902
    %v1060 = vunpack.c.h.b16 %v902
    %v1061 = vunpack.c.l.b16 %v903
    %v1062 = vunpack.c.h.b16 %v903
    %v1063 = vunpack.c.l.b16 %v904
    %v1064 = vunpack.c.h.b16 %v904
    %v1065 = vunpack.c.l.b16 %v905
    %v1066 = vunpack.c.h.b16 %v905
    %v1067 = vunpack.c.l.b16 %v906
    %v1068 = vunpack.c.h.b16 %v906
    %v1069 = vunpack.c.l.b16 %v907
    %v1070 = vunpack.c.h.b16 %v907
    %v1071 = vunpack.c.l.b16 %v908
    %v1072 = vunpack.c.h.b16 %v908
    %v1073 = vunpack.c.l.b16 %v909
    %v1074 = vunpack.c.h.b16 %v909
    %v1075 = vunpack.c.l.b16 %v910
    %v1076 = vunpack.c.h.b16 %v910
    %v1077 = vunpack.c.l.b16 %v911
    %v1078 = vunpack.c.h.b16 %v911
    %v1079 = vunpack.c.l.b16 %v912
    %v1080 = vunpack.c.h.b16 %v912
    %v1081 = vunpack.c.l.b16 %v913
    %v1082 = vunpack.c.h.b16 %v913
    %v1083 = vunpack.c.l.b16 %v914
    %v1084 = vunpack.c.h.b16 %v914
    %v1085 = vunpack.c.l.b16 %v915
    %v1086 = vunpack.c.h.b16 %v915
    %v1087 = vunpack.c.l.b16 %v916
    %v1088 = vunpack.c.h.b16 %v916
    %v1089 = vunpack.c.l.b16 %v917
    %v1090 = vunpack.c.h.b16 %v917
    %v1091 = vunpack.c.l.b16 %v918
    %v1092 = vunpack.c.h.b16 %v918
    %v1093 = vunpack.c.l.b16 %v919
    %v1094 = vunpack.c.h.b16 %v919
    %v1095 = vunpack.c.l.b16 %v920
    %v1096 = vunpack.c.h.b16 %v920
    %v1097 = vunpack.c.l.b16 %v921
    %v1098 = vunpack.c.h.b16 %v921
    %v1099 = vunpack.c.l.b16 %v922
    %v1100 = vunpack.c.h.b16 %v922
    %v1101 = vunpack.c.l.b16 %v923
    %v1102 = vunpack.c.h.b16 %v923
    %v1103 = vunpack.c.l.b16 %v924
    %v1104 = vunpack.c.h.b16 %v924
    %v1105 = vunpack.c.l.b16 %v925
    %v1106 = vunpack.c.h.b16 %v925
    %v1107 = vunpack.c.l.b16 %v926
    %v1108 = vunpack.c.h.b16 %v926
    %v1109 = vunpack.c.l.b16 %v927
    %v1110 = vunpack.c.h.b16 %v927
    %v1111 = vunpack.c.l.b16 %v928
    %v1112 = vunpack.c.h.b16 %v928
    %v1113 = vunpack.c.l.b16 %v929
    %v1114 = vunpack.c.h.b16 %v929
    %v1115 = vunpack.c.l.b16 %v930
    %v1116 = vunpack.c.h.b16 %v930
    %v1117 = vunpack.c.l.b16 %v931
    %v1118 = vunpack.c.h.b16 %v931
    %v1119 = vunpack.c.l.b16 %v932
    %v1120 = vunpack.c.h.b16 %v932
    %v1121 = vunpack.c.l.b16 %v933
    %v1122 = vunpack.c.h.b16 %v933
    %v1123 = vunpack.c.l.b16 %v934
    %v1124 = vunpack.c.h.b16 %v934
    %v1125 = vunpack.c.l.b16 %v935
    %v1126 = vunpack.c.h.b16 %v935
    %v1127 = vunpack.c.l.b16 %v936
    %v1128 = vunpack.c.h.b16 %v936
    %v1129 = vunpack.c.l.b16 %v937
    %v1130 = vunpack.c.h.b16 %v937
    %v1131 = vunpack.c.l.b16 %v938
    %v1132 = vunpack.c.h.b16 %v938
    %v1133 = vunpack.c.l.b16 %v939
    %v1134 = vunpack.c.h.b16 %v939
    %v1135 = vunpack.c.l.b16 %v940
    %v1136 = vunpack.c.h.b16 %v940
    %v1137 = vunpack.c.l.b16 %v941
    %v1138 = vunpack.c.h.b16 %v941
    %v1139 = vunpack.c.l.b16 %v942
    %v1140 = vunpack.c.h.b16 %v942
    %v1141 = vunpack.c.l.b16 %v943
    %v1142 = vunpack.c.h.b16 %v943
    %v1143 = vunpack.c.l.b16 %v944
    %v1144 = vunpack.c.h.b16 %v944
    %v1145 = vunpack.c.l.b16 %v945
    %v1146 = vunpack.c.h.b16 %v945
    %v1147 = vunpack.c.l.b16 %v946
    %v1148 = vunpack.c.h.b16 %v946
    %v1149 = vunpack.c.l.b16 %v947
    %v1150 = vunpack.c.h.b16 %v947
    %v1151 = vunpack.c.l.b16 %v948
    %v1152 = vunpack.c.h.b16 %v948
    %v1153 = vunpack.c.l.b16 %v949
    %v1154 = vunpack.c.h.b16 %v949
    %v1155 = vunpack.c.l.b16 %v950
    %v1156 = vunpack.c.h.b16 %v950
    %v1157 = vunpack.c.l.b16 %v951
    %v1158 = vunpack.c.h.b16 %v951
    %v1159 = vunpack.c.l.b16 %v952
    %v1160 = vunpack.c.h.b16 %v952
    %v1161 = vunpack.c.l.b16 %v953
    %v1162 = vunpack.c.h.b16 %v953
    %v1163 = vunpack.c.l.b16 %v954
    %v1164 = vunpack.c.h.b16 %v954
    %v1165 = vpack.c.b16 %v1045, %v1037
    %v1166 = vpack.c.b16 %v1046, %v1038
    %v1167 = vpack.c.b16 %v1047, %v1039
    %v1168 = vpack.c.b16 %v1048, %v1040
    %v1169 = vpack.c.b16 %v1049, %v1041
    %v1170 = vpack.c.b16 %v1050, %v1042
    %v1171 = vpack.c.b16 %v1051, %v1043
    %v1172 = vpack.c.b16 %v1052, %v1044
    %v1173 = vpack.c.b16 %v1061, %v1053
    %v1174 = vpack.c.b16 %v1062, %v1054
    %v1175 = vpack.c.b16 %v1063, %v1055
    %v1176 = vpack.c.b16 %v1064, %v1056
    %v1177 = vpack.c.b16 %v1065, %v1057
    %v1178 = vpack.c.b16 %v1066, %v1058
    %v1179 = vpack.c.b16 %v1067, %v1059
    %v1180 = vpack.c.b16 %v1068, %v1060
    %v1181 = vpack.c.b16 %v1077, %v1069
    %v1182 = vpack.c.b16 %v1078, %v1070
    %v1183 = vpack.c.b16 %v1079, %v1071
    %v1184 = vpack.c.b16 %v1080, %v1072
    %v1185 = vpack.c.b16 %v1081, %v1073
    %v1186 = vpack.c.b16 %v1082, %v1074
    %v1187 = vpack.c.b16 %v1083, %v1075
    %v1188 = vpack.c.b16 %v1084, %v1076
    %v1189 = vpack.c.b16 %v1093, %v1085
    %v1190 = vpack.c.b16 %v1094, %v1086
    %v1191 = vpack.c.b16 %v1095, %v1087
    %v1192 = vpack.c.b16 %v1096, %v1088
    %v1193 = vpack.c.b16 %v1097, %v1089
    %v1194 = vpack.c.b16 %v1098, %v1090
    %v1195 = vpack.c.b16 %v1099, %v1091
    %v1196 = vpack.c.b16 %v1100, %v1092
    %v1197 = vpack.c.b16 %v1109, %v1101
    %v1198 = vpack.c.b16 %v1110, %v1102
    %v1199 = vpack.c.b16 %v1111, %v1103
    %v1200 = vpack.c.b16 %v1112, %v1104
    %v1201 = vpack.c.b16 %v1113, %v1105
    %v1202 = vpack.c.b16 %v1114, %v1106
    %v1203 = vpack.c.b16 %v1115, %v1107
    %v1204 = vpack.c.b16 %v1116, %v1108
    %v1205 = vpack.c.b16 %v1125, %v1117
    %v1206 = vpack.c.b16 %v1126, %v1118
    %v1207 = vpack.c.b16 %v1127, %v1119
    %v1208 = vpack.c.b16 %v1128, %v1120
    %v1209 = vpack.c.b16 %v1129, %v1121
    %v1210 = vpack.c.b16 %v1130, %v1122
    %v1211 = vpack.c.b16 %v1131, %v1123
    %v1212 = vpack.c.b16 %v1132, %v1124
    %v1213 = vpack.c.b16 %v1141, %v1133
    %v1214 = vpack.c.b16 %v1142, %v1134
    %v1215 = vpack.c.b16 %v1143, %v1135
    %v1216 = vpack.c.b16 %v1144, %v1136
    %v1217 = vpack.c.b16 %v1145, %v1137
    %v1218 = vpack.c.b16 %v1146, %v1138
    %v1219 = vpack.c.b16 %v1147, %v1139
    %v1220 = vpack.c.b16 %v1148, %v1140
    %v1221 = vpack.c.b16 %v1157, %v1149
    %v1222 = vpack.c.b16 %v1158, %v1150
    %v1223 = vpack.c.b16 %v1159, %v1151
    %v1224 = vpack.c.b16 %v1160, %v1152
    %v1225 = vpack.c.b16 %v1161, %v1153
    %v1226 = vpack.c.b16 %v1162, %v1154
    %v1227 = vpack.c.b16 %v1163, %v1155
    %v1228 = vpack.c.b16 %v1164, %v1156
    %1293 = vmatpush.bf16.msra.mxu0 %v1221
    %1294 = vmatpush.bf16.msra.mxu0 %v1213
    %1295 = vmatpush.bf16.msra.mxu0 %v1205
    %1296 = vmatpush.bf16.msra.mxu0 %v1197
    %1297 = vmatpush.bf16.msra.mxu0 %v1189
    %1298 = vmatpush.bf16.msra.mxu0 %v1181
    %1299 = vmatpush.bf16.msra.mxu0 %v1173
    %1300 = vmatpush.bf16.msra.mxu0 %v1165
    %1301 = vmatmul.bf16.gmra.mxu0 %v890
    %v1302 = vpop.f32.mrf.mxu0
    %v1303 = vadd.f32 %v957, %v1302
    %v1304 = vpop.f32.mrf.mxu0
    %v1305 = vadd.f32 %v957, %v1304
    %1306 = vdwg.mxu0
    %1307 = vmatpush.bf16.msra.mxu0 %v1222
    %1308 = vmatpush.bf16.msra.mxu0 %v1214
    %1309 = vmatpush.bf16.msra.mxu0 %v1206
    %1310 = vmatpush.bf16.msra.mxu0 %v1198
    %1311 = vmatpush.bf16.msra.mxu0 %v1190
    %1312 = vmatpush.bf16.msra.mxu0 %v1182
    %1313 = vmatpush.bf16.msra.mxu0 %v1174
    %1314 = vmatpush.bf16.msra.mxu0 %v1166
    %1315 = vmatmul.bf16.gmra.mxu0 %v890
    %v1316 = vpop.f32.mrf.mxu0
    %v1317 = vadd.f32 %v958, %v1316
    %v1318 = vpop.f32.mrf.mxu0
    %v1319 = vadd.f32 %v958, %v1318
    %1320 = vdwg.mxu0
    %1321 = vmatpush.bf16.msra.mxu0 %v1223
    %1322 = vmatpush.bf16.msra.mxu0 %v1215
    %1323 = vmatpush.bf16.msra.mxu0 %v1207
    %1324 = vmatpush.bf16.msra.mxu0 %v1199
    %1325 = vmatpush.bf16.msra.mxu0 %v1191
    %1326 = vmatpush.bf16.msra.mxu0 %v1183
    %1327 = vmatpush.bf16.msra.mxu0 %v1175
    %1328 = vmatpush.bf16.msra.mxu0 %v1167
    %1329 = vmatmul.bf16.gmra.mxu0 %v890
    %v1330 = vpop.f32.mrf.mxu0
    %v1331 = vadd.f32 %v959, %v1330
    %v1332 = vpop.f32.mrf.mxu0
    %v1333 = vadd.f32 %v959, %v1332
    %1334 = vdwg.mxu0
    %1335 = vmatpush.bf16.msra.mxu0 %v1224
    %1336 = vmatpush.bf16.msra.mxu0 %v1216
    %1337 = vmatpush.bf16.msra.mxu0 %v1208
    %1338 = vmatpush.bf16.msra.mxu0 %v1200
    %1339 = vmatpush.bf16.msra.mxu0 %v1192
    %1340 = vmatpush.bf16.msra.mxu0 %v1184
    %1341 = vmatpush.bf16.msra.mxu0 %v1176
    %1342 = vmatpush.bf16.msra.mxu0 %v1168
    %1343 = vmatmul.bf16.gmra.mxu0 %v890
    %v1344 = vpop.f32.mrf.mxu0
    %v1345 = vadd.f32 %v960, %v1344
    %v1346 = vpop.f32.mrf.mxu0
    %v1347 = vadd.f32 %v960, %v1346
    %1348 = vdwg.mxu0
    %1349 = vmatpush.bf16.msra.mxu0 %v1225
    %1350 = vmatpush.bf16.msra.mxu0 %v1217
    %1351 = vmatpush.bf16.msra.mxu0 %v1209
    %1352 = vmatpush.bf16.msra.mxu0 %v1201
    %1353 = vmatpush.bf16.msra.mxu0 %v1193
    %1354 = vmatpush.bf16.msra.mxu0 %v1185
    %1355 = vmatpush.bf16.msra.mxu0 %v1177
    %1356 = vmatpush.bf16.msra.mxu0 %v1169
    %1357 = vmatmul.bf16.gmra.mxu0 %v890
    %v1358 = vpop.f32.mrf.mxu0
    %v1359 = vadd.f32 %v961, %v1358
    %v1360 = vpop.f32.mrf.mxu0
    %v1361 = vadd.f32 %v961, %v1360
    %1362 = vdwg.mxu0
    %1363 = vmatpush.bf16.msra.mxu0 %v1226
    %1364 = vmatpush.bf16.msra.mxu0 %v1218
    %1365 = vmatpush.bf16.msra.mxu0 %v1210
    %1366 = vmatpush.bf16.msra.mxu0 %v1202
    %1367 = vmatpush.bf16.msra.mxu0 %v1194
    %1368 = vmatpush.bf16.msra.mxu0 %v1186
    %1369 = vmatpush.bf16.msra.mxu0 %v1178
    %1370 = vmatpush.bf16.msra.mxu0 %v1170
    %1371 = vmatmul.bf16.gmra.mxu0 %v890
    %v1372 = vpop.f32.mrf.mxu0
    %v1373 = vadd.f32 %v962, %v1372
    %v1374 = vpop.f32.mrf.mxu0
    %v1375 = vadd.f32 %v962, %v1374
    %1376 = vdwg.mxu0
    %1377 = vmatpush.bf16.msra.mxu0 %v1227
    %1378 = vmatpush.bf16.msra.mxu0 %v1219
    %1379 = vmatpush.bf16.msra.mxu0 %v1211
    %1380 = vmatpush.bf16.msra.mxu0 %v1203
    %1381 = vmatpush.bf16.msra.mxu0 %v1195
    %1382 = vmatpush.bf16.msra.mxu0 %v1187
    %1383 = vmatpush.bf16.msra.mxu0 %v1179
    %1384 = vmatpush.bf16.msra.mxu0 %v1171
    %1385 = vmatmul.bf16.gmra.mxu0 %v890
    %v1386 = vpop.f32.mrf.mxu0
    %v1387 = vadd.f32 %v963, %v1386
    %v1388 = vpop.f32.mrf.mxu0
    %v1389 = vadd.f32 %v963, %v1388
    %1390 = vdwg.mxu0
    %1391 = vmatpush.bf16.msra.mxu0 %v1228
    %1392 = vmatpush.bf16.msra.mxu0 %v1220
    %1393 = vmatpush.bf16.msra.mxu0 %v1212
    %1394 = vmatpush.bf16.msra.mxu0 %v1204
    %1395 = vmatpush.bf16.msra.mxu0 %v1196
    %1396 = vmatpush.bf16.msra.mxu0 %v1188
    %1397 = vmatpush.bf16.msra.mxu0 %v1180
    %1398 = vmatpush.bf16.msra.mxu0 %v1172
    %1399 = vmatmul.bf16.gmra.mxu0 %v890
    %v1400 = vpop.f32.mrf.mxu0
    %v1401 = vadd.f32 %v964, %v1400
    %v1402 = vpop.f32.mrf.mxu0
    %v1403 = vadd.f32 %v964, %v1402
    %1404 = vdwg.mxu0
    %v1405 = vpack.c.bf16 %v1317, %v1303
    %v1406 = vpack.c.bf16 %v1345, %v1331
    %v1407 = vpack.c.bf16 %v1373, %v1359
    %v1408 = vpack.c.bf16 %v1401, %v1387
    %v1409 = vpack.c.bf16 %v1319, %v1305
    %v1410 = vpack.c.bf16 %v1347, %v1333
    %v1411 = vpack.c.bf16 %v1375, %v1361
    %v1412 = vpack.c.bf16 %v1403, %v1389
    %1413 = vst [vmem:[%s10] sm:$0xff] %v1405
    %1414 = vst [vmem:[%s10 + $0x8] sm:$0xff] %v1406
    %1415 = vst [vmem:[%s10 + $0x10] sm:$0xff] %v1407
    %1416 = vst [vmem:[%s10 + $0x18] sm:$0xff] %v1408
    %1417 = vst [vmem:[%s10 + $0x20] sm:$0xff] %v1409
    %1418 = vst [vmem:[%s10 + $0x28] sm:$0xff] %v1410
    %1419 = vst [vmem:[%s10 + $0x30] sm:$0xff] %v1411
    %1420 = vst [vmem:[%s10 + $0x38] sm:$0xff] %v1412
    // Predicated region
    $region46: #{autoencoder_forward.1} parent=1 // pred_check
      _
    $region47: #{autoencoder_forward.1} parent=1 // pred_check_branch
      %1422 = sbr.rel (0) target = $region49
    $region48: #{autoencoder_forward.1} parent=1 // pred_region
      _
    $region49: #{autoencoder_forward.1} parent=1 // pred_fallthru
      _
    // Predicated region
    $region50: #{autoencoder_forward.1} parent=1 // pred_check
      _
    $region51: #{autoencoder_forward.1} parent=1 // pred_check_branch
      %1424 = sbr.rel (0) target = $region53
    $region52: #{autoencoder_forward.1} parent=1 // pred_region
      _
    $region53: #{autoencoder_forward.1} parent=1 // pred_fallthru
      _
    // Predicated region
    $region54: #{autoencoder_forward.1} parent=1 // pred_check
      _
    $region55: #{autoencoder_forward.1} parent=1 // pred_check_branch
      %1426 = sbr.rel (0) target = $region57
    $region56: #{autoencoder_forward.1} parent=1 // pred_region
      _
    $region57: #{autoencoder_forward.1} parent=1 // pred_fallthru
      _
    // Predicated region
    $region58: #{autoencoder_forward.1} parent=1 // pred_check
      _
    $region59: #{autoencoder_forward.1} parent=1 // pred_check_branch
      %1428 = sbr.rel (0) target = $region61
    $region60: #{autoencoder_forward.1} parent=1 // pred_region
      _
    $region61: #{autoencoder_forward.1} parent=1 // pred_fallthru
      _
    %1429 = vsyncpa [#allocation3], 1
    %1430 = vsyncpa [#allocation5], 1

</llo_original>
